<compile_context>
chip_gen: v7x
topology: tpu7x:2x2x1
jax: 0.10.0
libtpu: 0.0.40
codegen_flags: <defaults>
</compile_context>

<pallas_src>
import jax
import jax.numpy as jnp
from jax.experimental import pallas as pl
from jax.experimental.pallas import tpu as pltpu


def _fused_kernel(x_ref, wct_ref, bcc_ref, w12_ref, b12_ref, out_ref, acc_ref):
    # x_ref:   (1, C_in, tS)   bf16  channel-major image tile (lane dim = spatial)
    # wct_ref: (C_feat, C_in)  bf16  backbone 1x1-conv weight, transposed
    # bcc_ref: (C_feat, 1)     f32   backbone bias (column)
    # w12_ref: (C_feat, NCp)   f32   folded head weight  (w1 @ w2) / S
    # b12_ref: (1, NCp)        f32   folded head bias     b1 @ w2 + b2
    # out_ref: (1, 1, NCp)     f32   padded logits block for this batch element
    # acc_ref: (C_feat, 1)     f32   GAP accumulator (persists across S steps)
    s = pl.program_id(1)

    @pl.when(s == 0)
    def _():
        acc_ref[...] = jnp.zeros_like(acc_ref)

    # Backbone stand-in: 1x1 conv as a single 2-D channel matmul on the MXU.
    # (C_feat, C_in) @ (C_in, tS) -> (C_feat, tS); spatial lanes are dense.
    x = x_ref[0]
    y = jnp.dot(wct_ref[...], x, preferred_element_type=jnp.float32)
    y = jnp.maximum(y + bcc_ref[...], 0.0)          # bias + ReLU in f32 (v5e-safe)

    # Partial global-average-pool: per-channel sum of this spatial tile (XLU).
    acc_ref[...] += jnp.sum(y, axis=1, keepdims=True)

    @pl.when(s == pl.num_programs(1) - 1)
    def _():
        # Head: reduction FC + classifier FC folded into one affine map; the
        # 1/S of the GAP is pre-folded into w12 by the wrapper.  Done
        # transpose-free as broadcast-multiply + sublane reduce (C_feat x NCp).
        logits = jnp.sum(acc_ref[...] * w12_ref[...], axis=0, keepdims=True)
        out_ref[0] = (logits + b12_ref[...]).astype(out_ref.dtype)


def _pick_tile_s(S, c_in, c_feat, budget_bytes=6 * 1024 * 1024):
    """Largest lane-dense (multiple-of-128) spatial tile that divides S and
    keeps 2x double-buffered bf16 x tiles + the f32 (C_feat, tS) activation
    inside a conservative per-step VMEM budget (safe on v5e/v6e/v7x).
    Falls back to tS = S (full block) when S is not a multiple of 128."""
    bytes_per_col = 2 * 2 * c_in + 4 * c_feat      # 2 bf16 x buffers + f32 act
    cap = max(128, (budget_bytes // max(bytes_per_col, 1)) // 128 * 128)
    t = (min(S, cap) // 128) * 128
    while t >= 128:
        if S % t == 0:
            return t
        t -= 128
    return S


def feat_extract_forward(x_nhwc, params):
    """x_nhwc: (B, H, W, C_in) float32. Returns (B, num_classes) float32."""
    B, H, W, C_in = x_nhwc.shape
    S = H * W

    wc, bc, w1, b1, w2, b2 = (params["wc"], params["bc"], params["w1"],
                              params["b1"], params["w2"], params["b2"])
    C_feat = wc.shape[1]
    num_classes = w2.shape[1]

    # ---- wrapper-side layout plumbing / constant folding (no hoisted compute) ----
    # channel-major x with the spatial axis on lanes; bf16 feeds the MXU.
    x_t = jnp.transpose(x_nhwc, (0, 3, 1, 2)).reshape(B, C_in, S).astype(jnp.bfloat16)
    wct = wc.T.astype(jnp.bfloat16)                       # (C_feat, C_in)
    bcc = bc.reshape(C_feat, 1).astype(jnp.float32)       # (C_feat, 1)

    # Fold the two head Linears (no nonlinearity between them) and the GAP 1/S.
    w12 = (w1 @ w2) * (1.0 / S)                           # (C_feat, num_classes)
    b12 = b1 @ w2 + b2                                    # (1, num_classes)

    # lane-dense padded output width
    ncp = ((num_classes + 127) // 128) * 128
    w12p = jnp.zeros((C_feat, ncp), jnp.float32).at[:, :num_classes].set(w12)
    b12p = jnp.zeros((1, ncp), jnp.float32).at[:, :num_classes].set(b12)

    tS = _pick_tile_s(S, C_in, C_feat)
    grid = (B, S // tS) if S % tS == 0 else (B, 1)

    const = lambda b, s: (0, 0)   # weights: same block across the whole grid

    out = pl.pallas_call(
        _fused_kernel,
        out_shape=jax.ShapeDtypeStruct((B, 1, ncp), jnp.float32),
        grid_spec=pltpu.PrefetchScalarGridSpec(
            num_scalar_prefetch=0,
            grid=grid,
            in_specs=[
                pl.BlockSpec((1, C_in, tS), lambda b, s: (b, 0, s)),
                pl.BlockSpec((C_feat, C_in), const),
                pl.BlockSpec((C_feat, 1), const),
                pl.BlockSpec((C_feat, ncp), const),
                pl.BlockSpec((1, ncp), const),
            ],
            out_specs=pl.BlockSpec((1, 1, ncp), lambda b, s: (b, 0, 0)),
            scratch_shapes=[pltpu.VMEM((C_feat, 1), jnp.float32)],
        ),
        compiler_params=pltpu.CompilerParams(
            dimension_semantics=("parallel", "arbitrary"),
            vmem_limit_bytes=32 * 1024 * 1024,
        ),
    )(x_t, wct, bcc, w12p, b12p)

    return out.reshape(B, ncp)[:, :num_classes]


def _reference(x_nhwc, params):
    """Pure-JAX reference (with the same bf16 quantization of the MXU inputs)."""
    B, H, W, C_in = x_nhwc.shape
    x = x_nhwc.astype(jnp.bfloat16).astype(jnp.float32).reshape(B, H * W, C_in)
    wc = params["wc"].astype(jnp.bfloat16).astype(jnp.float32)
    y = jnp.maximum(jnp.einsum("bsc,cf->bsf", x, wc) + params["bc"], 0.0)
    feat = jnp.mean(y, axis=1)
    red = feat @ params["w1"] + params["b1"]
    return red @ params["w2"] + params["b2"]


def init_params(key, c_in, cls_in_features, feat_dim, num_classes):
    k = jax.random.split(key, 6)
    scale = 0.05
    return {
        "wc": scale * jax.random.normal(k[0], (c_in, cls_in_features), jnp.float32),
        "bc": scale * jax.random.normal(k[1], (1, cls_in_features), jnp.float32),
        "w1": scale * jax.random.normal(k[2], (cls_in_features, feat_dim), jnp.float32),
        "b1": scale * jax.random.normal(k[3], (1, feat_dim), jnp.float32),
        "w2": scale * jax.random.normal(k[4], (feat_dim, num_classes), jnp.float32),
        "b2": scale * jax.random.normal(k[5], (1, num_classes), jnp.float32),
    }


if __name__ == "__main__":
    # Small shapes consistent with the module's forward:
    #   batch=2, channels=4, spatial=16x16, cls_in_features=32,
    #   feat_dim=128 (module default), num_classes=16.
    B, C_in, H, W = 2, 4, 16, 16
    cls_in_features, feat_dim, num_classes = 32, 128, 16

    key = jax.random.PRNGKey(0)
    kx, kp = jax.random.split(key)
    x = jax.random.normal(kx, (B, H, W, C_in), jnp.float32)
    params = init_params(kp, C_in, cls_in_features, feat_dim, num_classes)

    fwd = jax.jit(feat_extract_forward)
    out = fwd(x, params)
    out = jax.block_until_ready(out)

    ref = _reference(x, params)
    assert out.shape == (B, num_classes)
    assert jnp.allclose(out, ref, atol=2e-4, rtol=2e-4), "mismatch vs reference"

    print("KERNEL_OK")
</pallas_src>

<mosaic_0001>
module attributes {stable_mosaic.version = 11 : i64} {
  func.func @_fused_kernel(%arg0: i32, %arg1: i32, %arg2: memref<1x4x256xbf16, #tpu.memory_space<vmem>>, %arg3: memref<32x4xbf16, #tpu.memory_space<vmem>>, %arg4: memref<32x1xf32, #tpu.memory_space<vmem>>, %arg5: memref<32x128xf32, #tpu.memory_space<vmem>>, %arg6: memref<1x128xf32, #tpu.memory_space<vmem>>, %arg7: memref<1x1x128xf32, #tpu.memory_space<vmem>>, %arg8: memref<32x1xf32, #tpu.memory_space<vmem>>) attributes {dimension_semantics = [#tpu.dimension_semantics<parallel>, #tpu.dimension_semantics<arbitrary>], iteration_bounds = array<i64: 2, 1>, scalar_prefetch = 0 : i64, scratch_operands = 1 : i64, tpu.core_type = #tpu.core_type<tc>, window_params = [{transform_indices = @transform_0, window_bounds = array<i64: 1, 4, 256>}, {pipeline_mode = #tpu.pipeline_mode<synchronous>, transform_indices = @transform_1, window_bounds = array<i64: 32, 4>}, {pipeline_mode = #tpu.pipeline_mode<synchronous>, transform_indices = @transform_2, window_bounds = array<i64: 32, 1>}, {pipeline_mode = #tpu.pipeline_mode<synchronous>, transform_indices = @transform_3, window_bounds = array<i64: 32, 128>}, {pipeline_mode = #tpu.pipeline_mode<synchronous>, transform_indices = @transform_4, window_bounds = array<i64: 1, 128>}, {transform_indices = @transform_5, window_bounds = array<i64: 1, 1, 128>}]} {
    %c0_i32 = arith.constant 0 : i32
    %0 = arith.cmpi eq, %arg1, %c0_i32 : i32
    %1 = arith.extui %0 : i1 to i32
    %c0_i32_0 = arith.constant 0 : i32
    %2 = arith.cmpi ne, %1, %c0_i32_0 : i32
    scf.if %2 {
      %cst_15 = arith.constant 0.000000e+00 : f32
      %20 = vector.broadcast %cst_15 : f32 to vector<32x1xf32>
      %c0_16 = arith.constant 0 : index
      %c0_17 = arith.constant 0 : index
      %21 = vector.load %arg8[%c0_16, %c0_17] : memref<32x1xf32, #tpu.memory_space<vmem>>, vector<32x1xf32>
      tpu.vector_store %arg8[%c0_16, %c0_17], %20 {strides = array<i32>} : memref<32x1xf32, #tpu.memory_space<vmem>>, vector<32x1xf32>,
    } else {
    }
    %c0 = arith.constant 0 : index
    %c0_1 = arith.constant 0 : index
    %c0_2 = arith.constant 0 : index
    %3 = vector.load %arg2[%c0, %c0_1, %c0_2] : memref<1x4x256xbf16, #tpu.memory_space<vmem>>, vector<1x4x256xbf16>
    %4 = vector.shape_cast %3 : vector<1x4x256xbf16> to vector<4x256xbf16>
    %c0_3 = arith.constant 0 : index
    %c0_4 = arith.constant 0 : index
    %5 = vector.load %arg3[%c0_3, %c0_4] : memref<32x4xbf16, #tpu.memory_space<vmem>>, vector<32x4xbf16>
    %cst = arith.constant dense<0.000000e+00> : vector<32x256xf32>
    %6 = tpu.matmul %5, %4, %cst {dimension_numbers = #tpu.dot_dimension_numbers<[1], [0], [0], [1], [0, 0, 1, 1], [], []>} : vector<32x4xbf16>, vector<4x256xbf16>, vector<32x256xf32> -> vector<32x256xf32>
    %c0_5 = arith.constant 0 : index
    %c0_6 = arith.constant 0 : index
    %7 = vector.load %arg4[%c0_5, %c0_6] : memref<32x1xf32, #tpu.memory_space<vmem>>, vector<32x1xf32>
    %8 = vector.broadcast %7 : vector<32x1xf32> to vector<32x256xf32>
    %9 = arith.addf %6, %8 : vector<32x256xf32>
    %cst_7 = arith.constant 0.000000e+00 : f32
    %10 = vector.broadcast %cst_7 : f32 to vector<32x256xf32>
    %11 = arith.maximumf %9, %10 : vector<32x256xf32>
    %c0_8 = arith.constant 0 : index
    %c0_9 = arith.constant 0 : index
    %12 = vector.load %arg8[%c0_8, %c0_9] : memref<32x1xf32, #tpu.memory_space<vmem>>, vector<32x1xf32>
    %cst_10 = arith.constant dense<0.000000e+00> : vector<32xf32>
    %13 = vector.multi_reduction <add>, %11, %cst_10 [1] : vector<32x256xf32> to vector<32xf32>
    %14 = vector.shape_cast %13 : vector<32xf32> to vector<32x1xf32>
    %15 = arith.addf %12, %14 : vector<32x1xf32>
    %c0_11 = arith.constant 0 : index
    %c0_12 = arith.constant 0 : index
    %16 = vector.load %arg8[%c0_11, %c0_12] : memref<32x1xf32, #tpu.memory_space<vmem>>, vector<32x1xf32>
    tpu.vector_store %arg8[%c0_11, %c0_12], %15 {strides = array<i32>} : memref<32x1xf32, #tpu.memory_space<vmem>>, vector<32x1xf32>,
    %c0_i32_13 = arith.constant 0 : i32
    %17 = arith.cmpi eq, %arg1, %c0_i32_13 : i32
    %18 = arith.extui %17 : i1 to i32
    %c0_i32_14 = arith.constant 0 : i32
    %19 = arith.cmpi ne, %18, %c0_i32_14 : i32
    scf.if %19 {
      %c0_15 = arith.constant 0 : index
      %c0_16 = arith.constant 0 : index
      %20 = vector.load %arg8[%c0_15, %c0_16] : memref<32x1xf32, #tpu.memory_space<vmem>>, vector<32x1xf32>
      %c0_17 = arith.constant 0 : index
      %c0_18 = arith.constant 0 : index
      %21 = vector.load %arg5[%c0_17, %c0_18] : memref<32x128xf32, #tpu.memory_space<vmem>>, vector<32x128xf32>
      %22 = vector.broadcast %20 : vector<32x1xf32> to vector<32x128xf32>
      %23 = arith.mulf %22, %21 : vector<32x128xf32>
      %cst_19 = arith.constant dense<0.000000e+00> : vector<128xf32>
      %24 = vector.multi_reduction <add>, %23, %cst_19 [0] : vector<32x128xf32> to vector<128xf32>
      %25 = vector.shape_cast %24 : vector<128xf32> to vector<1x128xf32>
      %c0_20 = arith.constant 0 : index
      %c0_21 = arith.constant 0 : index
      %26 = vector.load %arg6[%c0_20, %c0_21] : memref<1x128xf32, #tpu.memory_space<vmem>>, vector<1x128xf32>
      %27 = arith.addf %25, %26 : vector<1x128xf32>
      %c0_22 = arith.constant 0 : index
      %c0_23 = arith.constant 0 : index
      %c0_24 = arith.constant 0 : index
      %28 = vector.load %arg7[%c0_22, %c0_23, %c0_24] : memref<1x1x128xf32, #tpu.memory_space<vmem>>, vector<1x1x128xf32>
      %29 = vector.shape_cast %28 : vector<1x1x128xf32> to vector<1x128xf32>
      %30 = vector.shape_cast %27 : vector<1x128xf32> to vector<1x1x128xf32>
      tpu.vector_store %arg7[%c0_22, %c0_23, %c0_24], %30 {strides = array<i32>} : memref<1x1x128xf32, #tpu.memory_space<vmem>>, vector<1x1x128xf32>,
    } else {
    }
    return
  }
  func.func @transform_0(%arg0: i32, %arg1: i32) -> (i32, i32, i32) {
    %c0_i32 = arith.constant 0 : i32
    %c0_i32_0 = arith.constant 0 : i32
    return %arg0, %c0_i32, %arg1 : i32, i32, i32
  }
  func.func @transform_1(%arg0: i32, %arg1: i32) -> (i32, i32) {
    %c0_i32 = arith.constant 0 : i32
    %c0_i32_0 = arith.constant 0 : i32
    %c0_i32_1 = arith.constant 0 : i32
    return %c0_i32, %c0_i32_0 : i32, i32
  }
  func.func @transform_2(%arg0: i32, %arg1: i32) -> (i32, i32) {
    %c0_i32 = arith.constant 0 : i32
    %c0_i32_0 = arith.constant 0 : i32
    %c0_i32_1 = arith.constant 0 : i32
    return %c0_i32, %c0_i32_0 : i32, i32
  }
  func.func @transform_3(%arg0: i32, %arg1: i32) -> (i32, i32) {
    %c0_i32 = arith.constant 0 : i32
    %c0_i32_0 = arith.constant 0 : i32
    %c0_i32_1 = arith.constant 0 : i32
    return %c0_i32, %c0_i32_0 : i32, i32
  }
  func.func @transform_4(%arg0: i32, %arg1: i32) -> (i32, i32) {
    %c0_i32 = arith.constant 0 : i32
    %c0_i32_0 = arith.constant 0 : i32
    %c0_i32_1 = arith.constant 0 : i32
    return %c0_i32, %c0_i32_0 : i32, i32
  }
  func.func @transform_5(%arg0: i32, %arg1: i32) -> (i32, i32, i32) {
    %c0_i32 = arith.constant 0 : i32
    %c0_i32_0 = arith.constant 0 : i32
    %c0_i32_1 = arith.constant 0 : i32
    return %arg0, %c0_i32, %c0_i32_0 : i32, i32, i32
  }
}

</mosaic_0001>

<llo_original>
// kernel: feat_extract_forward.1
$region0: #{feat_extract_forward.1}
  #allocation0 [shape = 'u32[]', space=smem, size = 0x4, offset = 0x4, fixed_abs, tag = 'smem constant byte address 0x4 - core index']
  #allocation1 [shape = 'u32[144,128]{1,0:T(1,128)}', space=vmem, size = 0x12000, scoped, tag = 'internal scratch']
  #allocation2 [shape = 'f32[32,1]{1,0:T(8,128)}', space=vmem, size = 0x4000, scoped, tag = 'scratch operand']
  %s0 = inlined_call_operand.vmem [shape: bf16[2,4,256], index: 0, kind: input, shape index: {}]
  %s1 = inlined_call_operand.vmem [shape: bf16[32,4], index: 1, kind: input, shape index: {}]
  %s2 = inlined_call_operand.vmem [shape: f32[32,1], index: 2, kind: input, shape index: {}]
  %s3 = inlined_call_operand.vmem [shape: f32[32,128], index: 3, kind: input, shape index: {}]
  %s4 = inlined_call_operand.vmem [shape: f32[1,128], index: 4, kind: input, shape index: {}]
  %s5 = inlined_call_operand.hbm [shape: f32[2,1,128], index: 5, kind: output, shape index: {}]
  %s6 = sld [smem:[#allocation0]]
  $region61: #{feat_extract_forward.1} parent=0
    _
  %s8 = ssub.s32 1, %s6
  %s9 = scalar_select 0, %s8, %s6
  $region1: #{feat_extract_forward.1} parent=0
    #allocation3 [shape = 'u8[1024]{0}', space=vmem, size = 0x400, scoped, tag = 'output window, operand 0']
    #allocation4 [shape = 's32[2]{0}', space=sflag, size = 0x8, scoped, tag = 'scoped memory for feat_extract_forward.1']
    %10 = vsyncpa [#allocation4], 0
    %s11 = scalar_lea.sflag [#allocation4], 1
    %12 = vsyncpa %s11, 0
    loop: start=0, step=1, limit=4
    $region2: #{feat_extract_forward.1} parent=1 // loop_pre_header
      _
    $region3: #{feat_extract_forward.1} parent=1 // loop_header
      %s14 = sphi 0, %s18
      %p15 = scmp.ge.s32.totalorder %s14, 4
      %s21 = sphi 0, %s33
      %s22 = sphi 0, %s29
      %s23 = sphi 0, %s21
      %s24 = sphi 0, %s22
      %s25 = sphi 0, %s23
      %s26 = sphi 0, %s24
      %s38 = sphi 0, %s40
      %s41 = sphi 0, %s38
      %s42 = sphi 0, %s41
      %s58 = sphi 0, %s42
      %s62 = sphi 0, %s62
      %s64 = sphi 0, %s62
      %s65 = sphi 0, %s64
      %s79 = sphi 0, %s65
      %s83 = sphi 0, %s83
      %s85 = sphi 0, %s83
      %s86 = sphi 0, %s85
      %s100 = sphi 0, %s86
      %s104 = sphi 0, %s104
      %s106 = sphi 0, %s104
      %s107 = sphi 0, %s106
      %s121 = sphi 0, %s107
      %s125 = sphi 0, %s125
      %s127 = sphi 0, %s125
      %s128 = sphi 0, %s127
      %s142 = sphi 0, %s128
      %s148 = sphi 0, %s150
      %s151 = sphi 0, %s148
      %s152 = sphi 0, %s151
      %s168 = sphi 0, %s152
    $region4: #{feat_extract_forward.1} parent=1 // loop_header_branch
      %17 = sbr.rel (%p15) target = $region8
    $region5: #{feat_extract_forward.1} parent=1 // loop_body
      %s19 = ssub.s32 %s14, 1
      %s20 = ssub.s32 %s14, 2
      %s27 = sadd.s32 1, %s22
      %p28 = scmp.ge.s32.totalorder %s27, 1
      %s29 = scalar_select %p28, 0, %s27
      %s30 = sadd.s32 1, %s21
      %s31 = scalar_select %p28, %s30, %s21
      %p32 = scmp.ge.s32.totalorder %s31, 2
      %s33 = scalar_select %p32, 0, %s31
      %s34 = ssub.s32 %s21, %s33
      %s35 = ssub.s32 %s22, %s29
      %s36 = sor.u32 %s34, %s35
      %p37 = scmp.eq.s32.totalorder %s36, 0
      %s39 = sadd.s32 %s38, 1
      %s40 = scalar_select %p37, %s38, %s39
      %p43 = pneg %p37
      %p44 = scmp.eq.s32.totalorder %s14, 1
      %p45 = por %p43, %p44
      %p46 = scmp.ne.s32.totalorder %s38, %s41
      %p47 = scmp.eq.s32.totalorder %s14, 0
      %p48 = por %p46, %p47
      %p49 = scmp.ne.s32.totalorder %s38, %s41
      %p50 = scmp.eq.s32.totalorder %s19, 1
      %p51 = por %p49, %p50
      %p52 = scmp.ne.s32.totalorder %s41, %s42
      %p53 = scmp.eq.s32.totalorder %s19, 0
      %p54 = por %p52, %p53
      %p55 = scmp.ne.s32.totalorder %s41, %s42
      %p56 = scmp.eq.s32.totalorder %s20, 1
      %p57 = por %p55, %p56
      %p59 = scmp.ne.s32.totalorder %s42, %s58
      %p60 = scmp.eq.s32.totalorder %s20, 0
      %p61 = por %p59, %p60
      %s63 = sadd.s32 %s62, 1
      %p66 = scmp.eq.s32.totalorder %s14, 1
      %p67 = scmp.ne.s32.totalorder %s62, %s64
      %p68 = scmp.eq.s32.totalorder %s14, 0
      %p69 = por %p67, %p68
      %p70 = scmp.ne.s32.totalorder %s62, %s64
      %p71 = scmp.eq.s32.totalorder %s19, 1
      %p72 = por %p70, %p71
      %p73 = scmp.ne.s32.totalorder %s64, %s65
      %p74 = scmp.eq.s32.totalorder %s19, 0
      %p75 = por %p73, %p74
      %p76 = scmp.ne.s32.totalorder %s64, %s65
      %p77 = scmp.eq.s32.totalorder %s20, 1
      %p78 = por %p76, %p77
      %p80 = scmp.ne.s32.totalorder %s65, %s79
      %p81 = scmp.eq.s32.totalorder %s20, 0
      %p82 = por %p80, %p81
      %s84 = sadd.s32 %s83, 1
      %p87 = scmp.eq.s32.totalorder %s14, 1
      %p88 = scmp.ne.s32.totalorder %s83, %s85
      %p89 = scmp.eq.s32.totalorder %s14, 0
      %p90 = por %p88, %p89
      %p91 = scmp.ne.s32.totalorder %s83, %s85
      %p92 = scmp.eq.s32.totalorder %s19, 1
      %p93 = por %p91, %p92
      %p94 = scmp.ne.s32.totalorder %s85, %s86
      %p95 = scmp.eq.s32.totalorder %s19, 0
      %p96 = por %p94, %p95
      %p97 = scmp.ne.s32.totalorder %s85, %s86
      %p98 = scmp.eq.s32.totalorder %s20, 1
      %p99 = por %p97, %p98
      %p101 = scmp.ne.s32.totalorder %s86, %s100
      %p102 = scmp.eq.s32.totalorder %s20, 0
      %p103 = por %p101, %p102
      %s105 = sadd.s32 %s104, 1
      %p108 = scmp.eq.s32.totalorder %s14, 1
      %p109 = scmp.ne.s32.totalorder %s104, %s106
      %p110 = scmp.eq.s32.totalorder %s14, 0
      %p111 = por %p109, %p110
      %p112 = scmp.ne.s32.totalorder %s104, %s106
      %p113 = scmp.eq.s32.totalorder %s19, 1
      %p114 = por %p112, %p113
      %p115 = scmp.ne.s32.totalorder %s106, %s107
      %p116 = scmp.eq.s32.totalorder %s19, 0
      %p117 = por %p115, %p116
      %p118 = scmp.ne.s32.totalorder %s106, %s107
      %p119 = scmp.eq.s32.totalorder %s20, 1
      %p120 = por %p118, %p119
      %p122 = scmp.ne.s32.totalorder %s107, %s121
      %p123 = scmp.eq.s32.totalorder %s20, 0
      %p124 = por %p122, %p123
      %s126 = sadd.s32 %s125, 1
      %p129 = scmp.eq.s32.totalorder %s14, 1
      %p130 = scmp.ne.s32.totalorder %s125, %s127
      %p131 = scmp.eq.s32.totalorder %s14, 0
      %p132 = por %p130, %p131
      %p133 = scmp.ne.s32.totalorder %s125, %s127
      %p134 = scmp.eq.s32.totalorder %s19, 1
      %p135 = por %p133, %p134
      %p136 = scmp.ne.s32.totalorder %s127, %s128
      %p137 = scmp.eq.s32.totalorder %s19, 0
      %p138 = por %p136, %p137
      %p139 = scmp.ne.s32.totalorder %s127, %s128
      %p140 = scmp.eq.s32.totalorder %s20, 1
      %p141 = por %p139, %p140
      %p143 = scmp.ne.s32.totalorder %s128, %s142
      %p144 = scmp.eq.s32.totalorder %s20, 0
      %p145 = por %p143, %p144
      %s146 = ssub.s32 %s21, %s33
      %p147 = scmp.eq.s32.totalorder %s146, 0
      %s149 = sadd.s32 %s148, 1
      %s150 = scalar_select %p147, %s148, %s149
      %p153 = pneg %p147
      %p154 = scmp.eq.s32.totalorder %s14, 1
      %p155 = por %p153, %p154
      %p156 = scmp.ne.s32.totalorder %s148, %s151
      %p157 = scmp.eq.s32.totalorder %s14, 0
      %p158 = por %p156, %p157
      %p159 = scmp.ne.s32.totalorder %s148, %s151
      %p160 = scmp.eq.s32.totalorder %s19, 1
      %p161 = por %p159, %p160
      %p162 = scmp.ne.s32.totalorder %s151, %s152
      %p163 = scmp.eq.s32.totalorder %s19, 0
      %p164 = por %p162, %p163
      %p165 = scmp.ne.s32.totalorder %s151, %s152
      %p166 = scmp.eq.s32.totalorder %s20, 1
      %p167 = por %p165, %p166
      %p169 = scmp.ne.s32.totalorder %s152, %s168
      %p170 = scmp.eq.s32.totalorder %s20, 0
      %p171 = por %p169, %p170
      %p172 = scmp.le.s32.totalorder 1, %s14
      %p173 = scmp.lt.s32.totalorder %s14, 3
      %p174 = pnand %p172, %p173
      %p175 = pneg %p174
      // Predicated region
      $region9: #{feat_extract_forward.1} parent=5 // pred_check
        _
      $region10: #{feat_extract_forward.1} parent=5 // pred_check_branch
        %177 = sbr.rel (%p174) target = $region12
      $region11: #{feat_extract_forward.1} parent=5 // pred_region
        %s178 = ssub.s32 %s14, 1
        // Predicated region
        $region13: #{feat_extract_forward.1} parent=11 // pred_check
          %p179 = pneg %p75
        $region14: #{feat_extract_forward.1} parent=11 // pred_check_branch
          %181 = sbr.rel (%p179) target = $region16
        $region15: #{feat_extract_forward.1} parent=11 // pred_region
          _
        $region16: #{feat_extract_forward.1} parent=11 // pred_fallthru
          _
        // Predicated region
        $region17: #{feat_extract_forward.1} parent=11 // pred_check
          %p182 = pneg %p96
        $region18: #{feat_extract_forward.1} parent=11 // pred_check_branch
          %184 = sbr.rel (%p182) target = $region20
        $region19: #{feat_extract_forward.1} parent=11 // pred_region
          _
        $region20: #{feat_extract_forward.1} parent=11 // pred_fallthru
          _
        // Predicated region
        $region21: #{feat_extract_forward.1} parent=11 // pred_check
          %p185 = pneg %p117
        $region22: #{feat_extract_forward.1} parent=11 // pred_check_branch
          %187 = sbr.rel (%p185) target = $region24
        $region23: #{feat_extract_forward.1} parent=11 // pred_region
          _
        $region24: #{feat_extract_forward.1} parent=11 // pred_fallthru
          _
        // Predicated region
        $region25: #{feat_extract_forward.1} parent=11 // pred_check
          %p188 = pneg %p138
        $region26: #{feat_extract_forward.1} parent=11 // pred_check_branch
          %190 = sbr.rel (%p188) target = $region28
        $region27: #{feat_extract_forward.1} parent=11 // pred_region
          _
        $region28: #{feat_extract_forward.1} parent=11 // pred_fallthru
          _
      $region12: #{feat_extract_forward.1} parent=5 // pred_fallthru
        _
      %p191 = scmp.lt.s32.totalorder %s14, 2
      // Predicated region
      $region29: #{feat_extract_forward.1} parent=5 // pred_check
        %p192 = pneg %p191
      $region30: #{feat_extract_forward.1} parent=5 // pred_check_branch
        %194 = sbr.rel (%p192) target = $region32
      $region31: #{feat_extract_forward.1} parent=5 // pred_region
        // Predicated region
        $region33: #{feat_extract_forward.1} parent=31 // pred_check
          %p195 = pneg %p48
        $region34: #{feat_extract_forward.1} parent=31 // pred_check_branch
          %197 = sbr.rel (%p195) target = $region36
        $region35: #{feat_extract_forward.1} parent=31 // pred_region
          %s198 = smul.u32 2, %s22
          %p199 = scmp.lt.s32.totalorder %s21, 1
          %s200 = scalar_select %p199, %s21, 1
          %p201 = scmp.lt.s32.totalorder %s198, 1
          %s202 = scalar_select %p201, %s198, 1
          %s203 = smul.addr %s200, 2
          %s204 = sadd.s32 %s202, %s203
          %s205 = smul.addr %s204, 2
          %s206 = scalar_lea.vmem %s0, %s205
          %s207 = smul.u32 2, %s22
        $region36: #{feat_extract_forward.1} parent=31 // pred_fallthru
          _
      $region32: #{feat_extract_forward.1} parent=5 // pred_fallthru
        _
      %p208 = scmp.le.s32.totalorder 1, %s14
      %p209 = scmp.lt.s32.totalorder %s14, 3
      %p210 = pnand %p208, %p209
      %p211 = pneg %p210
      // Predicated region
      $region37: #{feat_extract_forward.1} parent=5 // pred_check
        _
      $region38: #{feat_extract_forward.1} parent=5 // pred_check_branch
        %213 = sbr.rel (%p210) target = $region40
      $region39: #{feat_extract_forward.1} parent=5 // pred_region
        %s214 = ssub.s32 %s14, 1
        %s215 = smul.u32 2, %s24
        %p216 = scmp.lt.s32.totalorder %s23, 1
        %s217 = scalar_select %p216, %s23, 1
        %p218 = scmp.lt.s32.totalorder %s215, 1
        %s219 = scalar_select %p218, %s215, 1
        %s220 = smul.addr %s217, 2
        %s221 = sadd.s32 %s219, %s220
        %s222 = smul.addr %s221, 2
        %s223 = scalar_lea.vmem %s0, %s222
        %p224 = pneg %p54
        %p225 = pneg %p51
        %p226 = pneg %p75
        %p227 = pneg %p72
        %p228 = pneg %p96
        %p229 = pneg %p93
        %p230 = pneg %p117
        %p231 = pneg %p114
        %p232 = pneg %p138
        %p233 = pneg %p135
        %p234 = pneg %p164
        %p235 = pneg %p161
        %s236 = sand.u32 %s151, 1
        %s237 = scalar_lea.sflag [#allocation4], %s236
        %s238 = sand.u32 %s151, 1
        %s239 = scalar_lea.vmem [#allocation3], %s238
        %s240 = smul.u32 2, %s24
        %p241 = scmp.lt.s32.totalorder %s23, 1
        %s242 = scalar_select %p241, %s23, 1
        %p243 = scmp.lt.s32.totalorder %s240, 1
        %s244 = scalar_select %p243, %s240, 1
        %s245 = smul.addr %s242, 2
        %s246 = sadd.s32 %s244, %s245
        %s247 = smul.addr %s246, 2
        %s248 = scalar_lea.vmem %s0, %s247
        %s249 = smul.u32 2, %s24
        %p251 = scmp.eq.s32.totalorder %s24, 0
        // Predicated region
        $region41: #{feat_extract_forward.1} parent=39 // pred_check
          %p252 = pneg %p251
        $region42: #{feat_extract_forward.1} parent=39 // pred_check_branch
          %254 = sbr.rel (%p252) target = $region44
        $region43: #{feat_extract_forward.1} parent=39 // pred_region
          %vm255 = vcmask 7168
          %256 = vst.msk [vmem:[#allocation2] sm:$0xff] %vm255, 0.0
          %257 = vst.msk [vmem:[#allocation2 + $0x8] sm:$0xff] %vm255, 0.0
          %258 = vst.msk [vmem:[#allocation2 + $0x10] sm:$0xff] %vm255, 0.0
          %259 = vst.msk [vmem:[#allocation2 + $0x18] sm:$0xff] %vm255, 0.0
        $region44: #{feat_extract_forward.1} parent=39 // pred_fallthru
          _
        %v260 = vld [vmem:[%s248] sm:$0xf]
        %v261 = vld [vmem:[%s1] sm:$0xf]
        %v262 = vld [vmem:[%s1 + $0x4] sm:$0xf]
        %v263 = vld [vmem:[%s1 + $0x8] sm:$0xf]
        %v264 = vld [vmem:[%s1 + $0xc] sm:$0xf]
        %v265 = vld [vmem:[%s2] sm:$0xff]
        %v266 = vld [vmem:[%s2 + $0x8] sm:$0xff]
        %v267 = vld [vmem:[%s2 + $0x10] sm:$0xff]
        %v268 = vld [vmem:[%s2 + $0x18] sm:$0xff]
        %270 = vset.pattern.permute.xlu0 0
        %271 = vperm.xlu0 %270, %v265
        %v272 = vpop.permute.xlu0 %271
        %275 = vset.pattern.permute.xlu0 0
        %276 = vperm.xlu0 %275, %v266
        %v277 = vpop.permute.xlu0 %276
        %280 = vset.pattern.permute.xlu0 0
        %281 = vperm.xlu0 %280, %v267
        %v282 = vpop.permute.xlu0 %281
        %285 = vset.pattern.permute.xlu0 0
        %286 = vperm.xlu0 %285, %v268
        %v287 = vpop.permute.xlu0 %286
        %v293 = vunpack.c.l.b16 %v261
        %v294 = vunpack.c.l.b16 %v262
        %v295 = vunpack.c.l.b16 %v263
        %v296 = vunpack.c.l.b16 %v264
        %v297 = vpack.c.b16 %v294, %v293
        %v298 = vpack.c.b16 %v296, %v295
        %v301 = vunpack.c.l.s4 1983009808
        %v302 = vunpack.c.0.s8 %v301
        %v303 = vlaneseq
        %v304 = vshrl.u32 %v303, 7
        %v305 = vsub.s32 %v302, %v304
        %v306 = vrot.slane %v260, %v305
        %v307 = vcombine.high %v306, %v306
        %vm308 = vcmask 31744
        %v310 = vsel %vm308, %v297, 0
        %v313 = vsel %vm308, %v298, 0
        %vm315 = vcmask 1041408
        %v317 = vsel %vm315, %v306, 0
        %v320 = vsel %vm315, %v307, 0
        %322 = vmatprep.subr.bf16.mxu0 %v320
        %323 = vmatpush1.bf16.msra.mxu0 %v317
        %324 = vmatprep.subr.bf16.mxu0 0
        %325 = vmatpush1.bf16.msra.mxu0 0
        %326 = vmatprep.subr.bf16.mxu0 0
        %327 = vmatpush1.bf16.msra.mxu0 0
        %328 = vmatprep.subr.bf16.mxu0 0
        %329 = vmatpush1.bf16.msra.mxu0 0
        %330 = vmatprep.subr.bf16.mxu0 0
        %331 = vmatpush1.bf16.msra.mxu0 0
        %332 = vmatprep.subr.bf16.mxu0 0
        %333 = vmatpush1.bf16.msra.mxu0 0
        %334 = vmatprep.subr.bf16.mxu0 0
        %335 = vmatpush1.bf16.msra.mxu0 0
        %336 = vmatprep.subr.bf16.mxu0 0
        %337 = vmatpush1.bf16.msra.mxu0 0
        %338 = vmatprep.subr.bf16.mxu0 0
        %339 = vmatpush1.bf16.msra.mxu0 0
        %340 = vmatprep.subr.bf16.mxu0 0
        %341 = vmatpush1.bf16.msra.mxu0 0
        %342 = vmatprep.subr.bf16.mxu0 0
        %343 = vmatpush1.bf16.msra.mxu0 0
        %344 = vmatprep.subr.bf16.mxu0 0
        %345 = vmatpush1.bf16.msra.mxu0 0
        %346 = vmatprep.subr.bf16.mxu0 0
        %347 = vmatpush1.bf16.msra.mxu0 0
        %348 = vmatprep.subr.bf16.mxu0 0
        %349 = vmatpush1.bf16.msra.mxu0 0
        %350 = vmatprep.subr.bf16.mxu0 0
        %351 = vmatpush1.bf16.msra.mxu0 0
        %352 = vmatprep.subr.bf16.mxu0 0
        %353 = vmatpush1.bf16.msra.mxu0 0
        %354 = vmatprep.mubr.bf16.mxu0 0
        %355 = vmatmul.mubr.bf16.gmra.mrb[0].mxu0 %v310
        %v356 = vpop.f32.mrb[0].mxu0
        %v357 = vadd.f32 %v272, %v356
        %v358 = vpop.f32.mrb[0].mxu0
        %v359 = vadd.f32 %v272, %v358
        %v360 = vpop.f32.mrb[0].mxu0
        %v361 = vadd.f32 %v277, %v360
        %v362 = vpop.f32.mrb[0].mxu0
        %v363 = vadd.f32 %v277, %v362
        %364 = vmatprep.mubr.bf16.mxu0 0
        %365 = vmatmul.mubr.bf16.gmra.mrb[0].mxu0 %v313
        %v366 = vpop.f32.mrb[0].mxu0
        %v367 = vadd.f32 %v282, %v366
        %v368 = vpop.f32.mrb[0].mxu0
        %v369 = vadd.f32 %v282, %v368
        %v370 = vpop.f32.mrb[0].mxu0
        %v371 = vadd.f32 %v287, %v370
        %v372 = vpop.f32.mrb[0].mxu0
        %v373 = vadd.f32 %v287, %v372
        %374 = vdwg.mxu0
        %v375 = vmax.f32 %v357, 0.0
        %v376 = vmax.f32 %v359, 0.0
        %v377 = vmax.f32 %v361, 0.0
        %v378 = vmax.f32 %v363, 0.0
        %v379 = vmax.f32 %v367, 0.0
        %v380 = vmax.f32 %v369, 0.0
        %v381 = vmax.f32 %v371, 0.0
        %v382 = vmax.f32 %v373, 0.0
        %v383 = vld [vmem:[#allocation2] sm:$0xff]
        %v384 = vld [vmem:[#allocation2 + $0x8] sm:$0xff]
        %v385 = vld [vmem:[#allocation2 + $0x10] sm:$0xff]
        %v386 = vld [vmem:[#allocation2 + $0x18] sm:$0xff]
        %v387 = vadd.f32 %v375, %v376
        %388 = vadd.xlane.f32.xlu0 %v387
        %v389 = vpop.xlane.xlu0 %388
        %v390 = vadd.f32 %v377, %v378
        %391 = vadd.xlane.f32.xlu0 %v390
        %v392 = vpop.xlane.xlu0 %391
        %v393 = vadd.f32 %v379, %v380
        %394 = vadd.xlane.f32.xlu0 %v393
        %v395 = vpop.xlane.xlu0 %394
        %v396 = vadd.f32 %v381, %v382
        %397 = vadd.xlane.f32.xlu0 %v396
        %v398 = vpop.xlane.xlu0 %397
        %v399 = vadd.f32 %v383, %v389
        %v400 = vadd.f32 %v384, %v392
        %v401 = vadd.f32 %v385, %v395
        %v402 = vadd.f32 %v386, %v398
        %vm403 = vcmask 7168
        %404 = vst.msk [vmem:[#allocation2] sm:$0xff] %vm403, %v399
        %405 = vst.msk [vmem:[#allocation2 + $0x8] sm:$0xff] %vm403, %v400
        %406 = vst.msk [vmem:[#allocation2 + $0x10] sm:$0xff] %vm403, %v401
        %407 = vst.msk [vmem:[#allocation2 + $0x18] sm:$0xff] %vm403, %v402
        // Predicated region
        $region45: #{feat_extract_forward.1} parent=39 // pred_check
          %p408 = pneg %p251
        $region46: #{feat_extract_forward.1} parent=39 // pred_check_branch
          %410 = sbr.rel (%p408) target = $region48
        $region47: #{feat_extract_forward.1} parent=39 // pred_region
          %v411 = vld [vmem:[#allocation2] sm:$0xff]
          %v412 = vld [vmem:[#allocation2 + $0x8] sm:$0xff]
          %v413 = vld [vmem:[#allocation2 + $0x10] sm:$0xff]
          %v414 = vld [vmem:[#allocation2 + $0x18] sm:$0xff]
          %v415 = vld [vmem:[%s3] sm:$0xff]
          %v416 = vld [vmem:[%s3 + $0x8] sm:$0xff]
          %v417 = vld [vmem:[%s3 + $0x10] sm:$0xff]
          %v418 = vld [vmem:[%s3 + $0x18] sm:$0xff]
          %420 = vset.pattern.permute.xlu0 0
          %421 = vperm.xlu0 %420, %v411
          %v422 = vpop.permute.xlu0 %421
          %425 = vset.pattern.permute.xlu0 0
          %426 = vperm.xlu0 %425, %v412
          %v427 = vpop.permute.xlu0 %426
          %430 = vset.pattern.permute.xlu0 0
          %431 = vperm.xlu0 %430, %v413
          %v432 = vpop.permute.xlu0 %431
          %435 = vset.pattern.permute.xlu0 0
          %436 = vperm.xlu0 %435, %v414
          %v437 = vpop.permute.xlu0 %436
          %v439 = vmul.f32 %v422, %v415
          %v440 = vmul.f32 %v427, %v416
          %v441 = vmul.f32 %v432, %v417
          %v442 = vmul.f32 %v437, %v418
          %v443 = vadd.f32 %v439, %v440
          %v444 = vadd.f32 %v443, %v441
          %v445 = vadd.f32 %v444, %v442
          %v446 = vrot.slane %v445, 4
          %v447 = vadd.f32 %v445, %v446
          %v448 = vrot.slane %v447, 2
          %v449 = vadd.f32 %v447, %v448
          %v450 = vrot.slane %v449, 1
          %v451 = vadd.f32 %v449, %v450
          %v452 = vld [vmem:[%s4] sm:$0x1]
          %v453 = vadd.f32 %v451, %v452
          %454 = vst [vmem:[%s239] sm:$0x1] %v453
        $region48: #{feat_extract_forward.1} parent=39 // pred_fallthru
          _
        %s455 = sand.u32 %s151, 1
        %s456 = scalar_lea.sflag [#allocation4], %s455
        %s457 = sand.u32 %s151, 1
        %s458 = scalar_lea.vmem [#allocation3], %s457
        // Predicated region
        $region49: #{feat_extract_forward.1} parent=39 // pred_check
          %p459 = pneg %p161
        $region50: #{feat_extract_forward.1} parent=39 // pred_check_branch
          %461 = sbr.rel (%p459) target = $region52
        $region51: #{feat_extract_forward.1} parent=39 // pred_region
          %s463 = ssub.s32 16, 16
          %464 = vsyncadd %s456, %s463
          %s465 = smul.addr %s23, 16
          %s466 = scalar_lea.hbm %s5, %s465
          %s468 = sshll.u32 %s458, 4
          %s469 = int_to_ptr.vmem [resolvable:$true] %s468
          %471 = dma.vmem_to_hbm [thread:$0]  %s469, 16, %s466, %s456
        $region52: #{feat_extract_forward.1} parent=39 // pred_fallthru
          _
      $region40: #{feat_extract_forward.1} parent=5 // pred_fallthru
        _
      %p472 = scmp.le.s32.totalorder 2, %s14
      // Predicated region
      $region53: #{feat_extract_forward.1} parent=5 // pred_check
        %p473 = pneg %p472
      $region54: #{feat_extract_forward.1} parent=5 // pred_check_branch
        %475 = sbr.rel (%p473) target = $region56
      $region55: #{feat_extract_forward.1} parent=5 // pred_region
        %s476 = ssub.s32 %s14, 2
        // Predicated region
        $region57: #{feat_extract_forward.1} parent=55 // pred_check
          %p477 = pneg %p167
        $region58: #{feat_extract_forward.1} parent=55 // pred_check_branch
          %479 = sbr.rel (%p477) target = $region60
        $region59: #{feat_extract_forward.1} parent=55 // pred_region
          %s480 = sand.u32 %s152, 1
          %s481 = scalar_lea.sflag [#allocation4], %s480
          %s482 = sand.u32 %s152, 1
          %s483 = scalar_lea.vmem [#allocation3], %s482
          %484 = dma.done %s481, 16
        $region60: #{feat_extract_forward.1} parent=55 // pred_fallthru
          _
      $region56: #{feat_extract_forward.1} parent=5 // pred_fallthru
        _
    $region6: #{feat_extract_forward.1} parent=1 // loop_footer
      %s18 = sadd.s32 1, %s14
    $region7: #{feat_extract_forward.1} parent=1 // loop_footer_branch
      %13 = sbr.rel target = $region3
    $region8: #{feat_extract_forward.1} parent=1 // loop_exit
      _
    %485 = vsyncpa [#allocation4], 1
    %s486 = scalar_lea.sflag [#allocation4], 1
    %487 = vsyncpa %s486, 1

</llo_original>
